<compile_context>
chip_gen: v6e
topology: v6e:2x2x1
jax: 0.10.0
libtpu: 0.0.40
codegen_flags: <defaults>
</compile_context>

<pallas_src>
import jax
import jax.numpy as jnp
from jax import lax
from jax.experimental import pallas as pl
from jax.experimental.pallas import tpu as pltpu

_LANE = 128
_MAX_LANE_TILE = 4096                  # lane-dim tile cap (elements), multiple of 128
_MIN_PALLAS_BYTES = 256 * 1024         # below this, plain jnp.mean wins (launch overhead)
_MiB = 1024 * 1024


def _chip_params():
    """Returns (target input-block bytes per buffer, TensorCores sharing the grid)."""
    try:
        kind = jax.devices()[0].device_kind.lower()
    except Exception:  # pragma: no cover - CPU/interpret fallbacks
        kind = ""
    if "v7" in kind:
        # 64 MiB physical VMEM per TC, ~3.2 TB/s HBM, 2 TCs share the grid.
        return 8 * _MiB, 2
    if "v5 lite" in kind or "v5e" in kind or "v5lite" in kind:
        # ~0.8 TB/s HBM: a 4 MiB block already amortizes the ~0.35 us step cost to ~7%,
        # and keeps 2 buffers within the 16 MiB default scoped VMEM comfortably.
        return 4 * _MiB, 1
    # v6e / unknown: 128 MiB VMEM, ~1.4 TB/s HBM.
    return 8 * _MiB, 1


def _make_mean_kernel(num_refs: int, block_r: int, use_acc_scratch: bool, need_r_mask: bool):
    """Builds a kernel computing mean over the ref axis for one (tR, tL) block stream."""
    inv_r = 1.0 / float(num_refs)

    def kernel(refs_ref, out_ref, *scratch):
        # For f32 in/out we accumulate straight into the VMEM-resident output block.
        acc_ref = scratch[0] if use_acc_scratch else out_ref
        rc = pl.program_id(1)                    # reduction-chunk index (last grid axis)
        last = pl.num_programs(1) - 1

        @pl.when(rc == 0)
        def _init():
            acc_ref[...] = jnp.zeros_like(acc_ref)

        if need_r_mask:
            # Only the final reduction chunk can run past num_refs: pay the
            # iota/compare/select there and nowhere else.
            @pl.when(rc != last)
            def _acc_unmasked():
                acc_ref[...] += jnp.sum(refs_ref[...].astype(jnp.float32),
                                        axis=0, keepdims=True)

            @pl.when(rc == last)
            def _acc_masked():
                block = refs_ref[...].astype(jnp.float32)
                row = rc * block_r + lax.broadcasted_iota(jnp.int32, block.shape, 0)
                block = jnp.where(row < num_refs, block, 0.0)   # select, NaN-safe
                acc_ref[...] += jnp.sum(block, axis=0, keepdims=True)
        else:
            acc_ref[...] += jnp.sum(refs_ref[...].astype(jnp.float32),
                                    axis=0, keepdims=True)

        @pl.when(rc == last)
        def _finalize():
            out_ref[...] = (acc_ref[...] * inv_r).astype(out_ref.dtype)

    return kernel


def avg_parser_forward(content_embedding, refs_embeddings, *,
                       block_r=None, block_l=None, force_pallas=False):
    """Pallas equivalent of AvgParser.forward.

    content_embedding is accepted for interface parity but ignored (as in PyTorch).
    refs_embeddings: [R, S, H] -> returns [1, S, H] (mean over R).

    block_r / block_l optionally override tile sizes (block_r must be a multiple of 8
    or equal to R; block_l a multiple of 128 or equal to S*H).
    """
    del content_embedding  # unused, matches the PyTorch module
    R, S, H = refs_embeddings.shape
    if R == 0:
        raise ValueError("refs_embeddings must contain at least one reference (R > 0).")

    L = S * H
    dsize = refs_embeddings.dtype.itemsize
    out_dtype = refs_embeddings.dtype

    # ---- tiny-input short-circuit: XLA's fused reduce beats any grid launch ----
    if (not force_pallas and block_r is None and block_l is None
            and R * L * dsize < _MIN_PALLAS_BYTES):
        mean = jnp.mean(refs_embeddings.astype(jnp.float32), axis=0, keepdims=True)
        return mean.astype(out_dtype)

    refs2d = refs_embeddings.reshape(R, L)          # lane-dense layout, free reshape
    target_block_bytes, num_tc = _chip_params()

    # ---- lane (last-dim) tile ----
    if block_l is not None:
        tL = block_l
    elif L % _LANE == 0:
        tL = min(L, _MAX_LANE_TILE)
        # v7x: make sure the "parallel" L axis has >= 2 blocks so both TCs work.
        if num_tc >= 2 and tL == L and L >= 2 * _LANE:
            tL = max(_LANE, ((L // 2) // _LANE) * _LANE)
    else:
        tL = L  # full-extent escape hatch for the (8,128) rule

    # ---- reduction (ref-dim) tile: as many refs per step as fit the block budget ----
    # Round to the dtype-native sublane multiple (f32: 8, bf16: 16, int8/fp8: 32).
    sublane_mult = max(8, 32 // max(1, dsize))
    if block_r is not None:
        tR = block_r
    else:
        max_tr = max(1, target_block_bytes // (tL * dsize))
        if R <= max_tr:
            tR = R
        else:
            tR = max(sublane_mult, (max_tr // sublane_mult) * sublane_mult)
            tR = min(tR, R)

    nL = pl.cdiv(L, tL)
    nR = pl.cdiv(R, tR)

    use_acc_scratch = out_dtype != jnp.float32      # f32: accumulate directly in out block
    need_r_mask = (R % tR) != 0

    kernel = _make_mean_kernel(R, tR, use_acc_scratch, need_r_mask)
    scratch_shapes = [pltpu.VMEM((1, tL), jnp.float32)] if use_acc_scratch else []

    # ---- buffering & VMEM budget ----
    block_bytes = tR * tL * dsize
    in_buffers = 2
    in_spec_kwargs = {}
    if num_tc >= 2 and nR >= 4 and block_bytes <= 2 * _MiB:
        # v7x only: short per-block DMAs -> a third buffer hides DMA turnaround.
        in_buffers = 3
        in_spec_kwargs = dict(pipeline_mode=pl.Buffered(3))

    out_bytes = 2 * tL * jnp.dtype(out_dtype).itemsize         # double-buffered out block
    scratch_bytes = tL * 4 if use_acc_scratch else 0
    vmem_limit = in_buffers * block_bytes + out_bytes + scratch_bytes + 2 * _MiB
    vmem_limit = max(vmem_limit, 16 * _MiB)
    vmem_limit = min(vmem_limit, 48 * _MiB)                     # never plan past v7x's 64 MiB

    out2d = pl.pallas_call(
        kernel,
        out_shape=jax.ShapeDtypeStruct((1, L), out_dtype),
        grid=(nL, nR),                               # spatial axis first, reduction last
        in_specs=[pl.BlockSpec((tR, tL), lambda l, r: (r, l), **in_spec_kwargs)],
        out_specs=pl.BlockSpec((1, tL), lambda l, r: (0, l)),   # resident across r
        scratch_shapes=scratch_shapes,
        compiler_params=pltpu.CompilerParams(
            dimension_semantics=("parallel", "arbitrary"),
            vmem_limit_bytes=int(vmem_limit),
        ),
    )(refs2d)

    return out2d.reshape(1, S, H)


if __name__ == "__main__":
    key = jax.random.PRNGKey(0)
    k_content, k_refs = jax.random.split(key)

    # --- small shapes matching the module's forward: content [1,S,H], refs [R,S,H] ---
    R, S, H = 8, 8, 32
    content_embedding = jax.random.normal(k_content, (1, S, H), dtype=jnp.float32)
    refs_embeddings = jax.random.normal(k_refs, (R, S, H), dtype=jnp.float32)
    ref = jnp.mean(refs_embeddings, axis=0)[None, ...]

    # 1) Default path: tiny input -> XLA short-circuit (semantics identical).
    out = jax.block_until_ready(avg_parser_forward(content_embedding, refs_embeddings))
    assert out.shape == (1, S, H)
    assert out.dtype == refs_embeddings.dtype
    assert jnp.allclose(out, ref, atol=1e-5, rtol=1e-5)

    # 2) Forced Pallas path at the same small shapes (single grid step).
    out_p = jax.block_until_ready(
        avg_parser_forward(content_embedding, refs_embeddings, force_pallas=True))
    assert out_p.shape == (1, S, H) and out_p.dtype == refs_embeddings.dtype
    assert jnp.allclose(out_p, ref, atol=1e-5, rtol=1e-5)

    # 3) Multi-block path: 2-D grid, unmasked chunks + masked last reduction chunk.
    R2, S2, H2 = 20, 16, 64  # L = 1024, R % tR != 0 with block_r=8
    refs2 = jax.random.normal(jax.random.PRNGKey(1), (R2, S2, H2), dtype=jnp.float32)
    out2 = jax.block_until_ready(
        avg_parser_forward(jnp.zeros((1, S2, H2), jnp.float32), refs2,
                           block_r=8, block_l=128))
    ref2 = jnp.mean(refs2, axis=0)[None, ...]
    assert jnp.allclose(out2, ref2, atol=1e-5, rtol=1e-5)

    # 4) bf16 path (f32 scratch accumulator, cast on finalize), forced through Pallas.
    refs_bf16 = refs_embeddings.astype(jnp.bfloat16)
    out_bf16 = jax.block_until_ready(
        avg_parser_forward(content_embedding, refs_bf16, force_pallas=True))
    ref_bf16 = jnp.mean(refs_bf16.astype(jnp.float32), axis=0)[None, ...]
    assert out_bf16.dtype == jnp.bfloat16
    assert jnp.allclose(out_bf16.astype(jnp.float32), ref_bf16, atol=1e-2, rtol=1e-2)

    print("KERNEL_OK")
</pallas_src>

<mosaic_0001>
module attributes {stable_mosaic.version = 11 : i64} {
  func.func @kernel(%arg0: i32, %arg1: i32, %arg2: memref<8x256xf32, #tpu.memory_space<vmem>>, %arg3: memref<1x256xf32, #tpu.memory_space<vmem>>) attributes {dimension_semantics = [#tpu.dimension_semantics<parallel>, #tpu.dimension_semantics<arbitrary>], iteration_bounds = array<i64: 1, 1>, scalar_prefetch = 0 : i64, scratch_operands = 0 : i64, tpu.core_type = #tpu.core_type<tc>, window_params = [{transform_indices = @transform_0, window_bounds = array<i64: 8, 256>}, {transform_indices = @transform_1, window_bounds = array<i64: 1, 256>}]} {
    %c0_i32 = arith.constant 0 : i32
    %0 = arith.cmpi eq, %arg1, %c0_i32 : i32
    %1 = arith.extui %0 : i1 to i32
    %c0_i32_0 = arith.constant 0 : i32
    %2 = arith.cmpi ne, %1, %c0_i32_0 : i32
    scf.if %2 {
      %cst_8 = arith.constant 0.000000e+00 : f32
      %12 = vector.broadcast %cst_8 : f32 to vector<1x256xf32>
      %c0_9 = arith.constant 0 : index
      %c0_10 = arith.constant 0 : index
      %13 = vector.load %arg3[%c0_9, %c0_10] : memref<1x256xf32, #tpu.memory_space<vmem>>, vector<1x256xf32>
      tpu.vector_store %arg3[%c0_9, %c0_10], %12 {strides = array<i32>} : memref<1x256xf32, #tpu.memory_space<vmem>>, vector<1x256xf32>,
    } else {
    }
    %c0 = arith.constant 0 : index
    %c0_1 = arith.constant 0 : index
    %3 = vector.load %arg3[%c0, %c0_1] : memref<1x256xf32, #tpu.memory_space<vmem>>, vector<1x256xf32>
    %c0_2 = arith.constant 0 : index
    %c0_3 = arith.constant 0 : index
    %4 = vector.load %arg2[%c0_2, %c0_3] : memref<8x256xf32, #tpu.memory_space<vmem>>, vector<8x256xf32>
    %cst = arith.constant dense<0.000000e+00> : vector<256xf32>
    %5 = vector.multi_reduction <add>, %4, %cst [0] : vector<8x256xf32> to vector<256xf32>
    %6 = vector.shape_cast %5 : vector<256xf32> to vector<1x256xf32>
    %7 = arith.addf %3, %6 : vector<1x256xf32>
    %c0_4 = arith.constant 0 : index
    %c0_5 = arith.constant 0 : index
    %8 = vector.load %arg3[%c0_4, %c0_5] : memref<1x256xf32, #tpu.memory_space<vmem>>, vector<1x256xf32>
    tpu.vector_store %arg3[%c0_4, %c0_5], %7 {strides = array<i32>} : memref<1x256xf32, #tpu.memory_space<vmem>>, vector<1x256xf32>,
    %c0_i32_6 = arith.constant 0 : i32
    %9 = arith.cmpi eq, %arg1, %c0_i32_6 : i32
    %10 = arith.extui %9 : i1 to i32
    %c0_i32_7 = arith.constant 0 : i32
    %11 = arith.cmpi ne, %10, %c0_i32_7 : i32
    scf.if %11 {
      %c0_8 = arith.constant 0 : index
      %c0_9 = arith.constant 0 : index
      %12 = vector.load %arg3[%c0_8, %c0_9] : memref<1x256xf32, #tpu.memory_space<vmem>>, vector<1x256xf32>
      %cst_10 = arith.constant 1.250000e-01 : f32
      %13 = vector.broadcast %cst_10 : f32 to vector<1x256xf32>
      %14 = arith.mulf %12, %13 : vector<1x256xf32>
      %c0_11 = arith.constant 0 : index
      %c0_12 = arith.constant 0 : index
      %15 = vector.load %arg3[%c0_11, %c0_12] : memref<1x256xf32, #tpu.memory_space<vmem>>, vector<1x256xf32>
      tpu.vector_store %arg3[%c0_11, %c0_12], %14 {strides = array<i32>} : memref<1x256xf32, #tpu.memory_space<vmem>>, vector<1x256xf32>,
    } else {
    }
    return
  }
  func.func @transform_0(%arg0: i32, %arg1: i32) -> (i32, i32) {
    %c0_i32 = arith.constant 0 : i32
    return %arg1, %arg0 : i32, i32
  }
  func.func @transform_1(%arg0: i32, %arg1: i32) -> (i32, i32) {
    %c0_i32 = arith.constant 0 : i32
    %c0_i32_0 = arith.constant 0 : i32
    return %c0_i32, %arg0 : i32, i32
  }
}

</mosaic_0001>

<llo_original>
// kernel: tpu_custom_call.1
$region0: #{tpu_custom_call.1}
  #allocation0 [shape = 'u32[]', space=smem, size = 0x4, offset = 0x4, fixed_abs, tag = 'smem constant byte address 0x4 - core index']
  #allocation1 [shape = 'u32[144,128]{1,0:T(1,128)}', space=vmem, size = 0x12000, scoped, tag = 'internal scratch']
  %s0 = inlined_call_operand.hbm [shape: f32[8,256], index: 0, kind: input, shape index: {}]
  %s1 = inlined_call_operand.hbm [shape: f32[1,256], index: 1, kind: output, shape index: {}]
  %s2 = sld [smem:[#allocation0]]
  $region26: #{tpu_custom_call.1} parent=0
    _
  %s4 = ssub.s32 1, %s2
  %s5 = scalar_select 0, %s4, %s2
  $region1: #{tpu_custom_call.1} parent=0
    #allocation2 [shape = 'u8[8192]{0}', space=vmem, size = 0x2000, scoped, tag = 'input window, operand 0, single buffered']
    #allocation3 [shape = 's32[1]{0}', space=sflag, size = 0x4, scoped, tag = 'scoped memory for tpu_custom_call.1']
    #allocation4 [shape = 's32[1]{0}', space=sflag, size = 0x4, scoped, tag = 'scoped memory for tpu_custom_call.1']
    #allocation5 [shape = 'u8[1024]{0}', space=vmem, size = 0x400, scoped, tag = 'output window, operand 0, single buffered']
    %6 = vsyncpa [#allocation3], 0
    %7 = vsyncpa [#allocation4], 0
    // Predicated region
    $region2: #{tpu_custom_call.1} parent=1 // pred_check
      _
    $region3: #{tpu_custom_call.1} parent=1 // pred_check_branch
      %9 = sbr.rel (0) target = $region5
    $region4: #{tpu_custom_call.1} parent=1 // pred_region
      %s11 = ssub.s32 256, 256
      %12 = vsyncadd [#allocation3], %s11
      %s14 = sshll.u32 [#allocation2], 4
      %s15 = int_to_ptr.vmem [resolvable:$true] %s14
      %17 = dma.hbm_to_vmem [thread:$0]  %s0, 256, %s15, [#allocation3]
    $region5: #{tpu_custom_call.1} parent=1 // pred_fallthru
      _
    // Predicated region
    $region6: #{tpu_custom_call.1} parent=1 // pred_check
      _
    $region7: #{tpu_custom_call.1} parent=1 // pred_check_branch
      %19 = sbr.rel (0) target = $region9
    $region8: #{tpu_custom_call.1} parent=1 // pred_region
      %20 = dma.done [#allocation3], 256
    $region9: #{tpu_custom_call.1} parent=1 // pred_fallthru
      _
    %p21 = scmp.eq.s32.totalorder 0, 0
    // Predicated region
    $region10: #{tpu_custom_call.1} parent=1 // pred_check
      %p22 = pneg %p21
    $region11: #{tpu_custom_call.1} parent=1 // pred_check_branch
      %24 = sbr.rel (%p22) target = $region13
    $region12: #{tpu_custom_call.1} parent=1 // pred_region
      %v25 = vlaneseq
      %vm26 = vcmp.ge.s32.totalorder %v25, 0
      %vm27 = vcmp.lt.s32.totalorder %v25, 256
      %vm28 = vmand %vm26, %vm27
      %29 = vst.msk [vmem:[#allocation5] sm:$0x3] %vm28, 0.0
    $region13: #{tpu_custom_call.1} parent=1 // pred_fallthru
      _
    %v30 = vld [vmem:[#allocation5] sm:$0x3]
    %v31 = vld [vmem:[#allocation2] sm:$0xff]
    %v32 = vld [vmem:[#allocation2 + $0x8] sm:$0xff]
    %v33 = vrot.slane %v31, 4
    %v34 = vadd.f32 %v31, %v33
    %v35 = vrot.slane %v34, 2
    %v36 = vadd.f32 %v34, %v35
    %v37 = vrot.slane %v36, 1
    %v38 = vadd.f32 %v36, %v37
    %v39 = vrot.slane %v32, 4
    %v40 = vadd.f32 %v32, %v39
    %v41 = vrot.slane %v40, 2
    %v42 = vadd.f32 %v40, %v41
    %v43 = vrot.slane %v42, 1
    %v44 = vadd.f32 %v42, %v43
    %v47 = vcombine.low %v38, %v44
    %v49 = vunpack.c.l.s4 1966171168
    %v50 = vunpack.c.0.s8 %v49
    %v51 = vlaneseq
    %v52 = vshrl.u32 %v51, 7
    %v53 = vsub.s32 %v50, %v52
    %v54 = vrot.slane %v47, %v53
    %v56 = vunpack.c.l.s4 1966171168
    %v57 = vunpack.c.0.s8 %v56
    %v58 = vlaneseq
    %v59 = vshrl.u32 %v58, 7
    %v60 = vsub.s32 %v57, %v59
    %v61 = vrot.slane %v54, %v60
    %v63 = vadd.f32 %v30, %v61
    %v64 = vlaneseq
    %vm65 = vcmp.ge.s32.totalorder %v64, 0
    %vm66 = vcmp.lt.s32.totalorder %v64, 256
    %vm67 = vmand %vm65, %vm66
    %68 = vst.msk [vmem:[#allocation5] sm:$0x3] %vm67, %v63
    // Predicated region
    $region14: #{tpu_custom_call.1} parent=1 // pred_check
      %p69 = pneg %p21
    $region15: #{tpu_custom_call.1} parent=1 // pred_check_branch
      %71 = sbr.rel (%p69) target = $region17
    $region16: #{tpu_custom_call.1} parent=1 // pred_region
      %v72 = vld [vmem:[#allocation5] sm:$0x3]
      %v73 = vmul.f32 %v72, 0.125
      %74 = vst.msk [vmem:[#allocation5] sm:$0x3] %vm67, %v73
    $region17: #{tpu_custom_call.1} parent=1 // pred_fallthru
      _
    // Predicated region
    $region18: #{tpu_custom_call.1} parent=1 // pred_check
      _
    $region19: #{tpu_custom_call.1} parent=1 // pred_check_branch
      %76 = sbr.rel (0) target = $region21
    $region20: #{tpu_custom_call.1} parent=1 // pred_region
      %s78 = ssub.s32 32, 32
      %79 = vsyncadd [#allocation4], %s78
      %s81 = sshll.u32 [#allocation5], 4
      %s82 = int_to_ptr.vmem [resolvable:$true] %s81
      %84 = dma.vmem_to_hbm [thread:$0]  %s82, 32, %s1, [#allocation4]
    $region21: #{tpu_custom_call.1} parent=1 // pred_fallthru
      _
    // Predicated region
    $region22: #{tpu_custom_call.1} parent=1 // pred_check
      _
    $region23: #{tpu_custom_call.1} parent=1 // pred_check_branch
      %86 = sbr.rel (0) target = $region25
    $region24: #{tpu_custom_call.1} parent=1 // pred_region
      %87 = dma.done [#allocation4], 32
    $region25: #{tpu_custom_call.1} parent=1 // pred_fallthru
      _
    %88 = vsyncpa [#allocation3], 1
    %89 = vsyncpa [#allocation4], 1

</llo_original>
